<compile_context>
chip_gen: v6e
topology: v6e:2x2x1
jax: 0.10.0
libtpu: 0.0.40
codegen_flags: <defaults>
</compile_context>

<pallas_src>
import functools

import jax
import jax.numpy as jnp
from jax.experimental import pallas as pl
from jax.experimental.pallas import tpu as pltpu


def _cdiv(a, b):
    return -(-a // b)


def _round_up(v, m):
    return ((v + m - 1) // m) * m


def _pick_tile_n(n, cap=65536):
    """Lane-axis (batch) tile size."""
    if n <= 256:
        # Single block equal to the full array dim (legal even if not a
        # multiple of 128); at this size the kernel is pure launch overhead.
        return n
    # Lane-dense tiles: multiple of 128, >= 2 grid steps so the "parallel"
    # batch axis can split across both v7x TensorCores, capped so the
    # double-buffered x + out blocks stay well inside scoped VMEM everywhere.
    return min(cap, _round_up(_cdiv(n, 2), 128))


def _mlp_kernel(x_ref, w1t_ref, b1_ref, w3_ref, b3_ref, o_ref, *, din, hdim):
    x = x_ref[...]                                 # (din, tile_n) f32
    if din >= 16 or hdim >= 128:
        # Wide layers: one MXU matmul beats unrolled broadcast-FMAs.
        h = jnp.dot(w1t_ref[...], x,
                    preferred_element_type=jnp.float32) + b1_ref[...]
    else:
        # fc1 on the VPU: din broadcast multiply-adds, batch on the lane axis.
        h = b1_ref[...]                            # (H, 1) -> broadcasts over lanes
        for d in range(din):                       # din static; unrolled at trace time
            h = h + w1t_ref[:, d:d + 1] * x[d:d + 1, :]
    h = jnp.maximum(h, 0.0)                        # (H, tile_n)
    # fc3 (H -> 1): per-row weight then a short sublane reduce over the H rows.
    y = jnp.sum(h * w3_ref[...], axis=0, keepdims=True) + b3_ref[0]
    o_ref[...] = (jnp.maximum(y, 0.0) + 1e-5).astype(o_ref.dtype)


def prepare_h_params(w1, b1, w3, b3):
    """One-time parameter prep, hoisted off the per-call path."""
    din, hdim = w1.shape
    return (jnp.asarray(w1, jnp.float32).T,                  # (H, din) fc1 weight rows
            jnp.asarray(b1, jnp.float32).reshape(hdim, 1),   # (H, 1)
            jnp.asarray(w3, jnp.float32).reshape(hdim, 1),   # (H, 1) fc3 weight column
            jnp.asarray(b3, jnp.float32).reshape(1))         # (1,)  -> SMEM scalar


@jax.jit
def h_forward(x, params):
    """x: (N, din) f32 -> (N, 1) f32."""
    w1t, b1c, w3c, b3 = params
    n, din = x.shape
    hdim = w1t.shape[0]

    tile_n = _pick_tile_n(n)
    grid = (_cdiv(n, tile_n),)

    # Batch onto the lane axis: one transpose in the wrapper, fully dense
    # input/output DMAs in the kernel.
    xt = x.T                                       # (din, N)

    kernel = functools.partial(_mlp_kernel, din=din, hdim=hdim)

    out = pl.pallas_call(
        kernel,
        out_shape=jax.ShapeDtypeStruct((1, n), jnp.float32),
        grid_spec=pltpu.PrefetchScalarGridSpec(
            num_scalar_prefetch=0,
            grid=grid,
            in_specs=[
                # Activations tiled over the batch (lane) axis.
                pl.BlockSpec((din, tile_n), lambda i: (0, i)),
                # Tiny parameters, resident across all grid steps.
                pl.BlockSpec((hdim, din), lambda i: (0, 0)),
                pl.BlockSpec((hdim, 1), lambda i: (0, 0)),
                pl.BlockSpec((hdim, 1), lambda i: (0, 0)),
                # Scalar bias in SMEM: no padded VMEM tile / extra DMA.
                pl.BlockSpec(memory_space=pltpu.MemorySpace.SMEM),
            ],
            out_specs=pl.BlockSpec((1, tile_n), lambda i: (0, i)),
        ),
        compiler_params=pltpu.CompilerParams(
            dimension_semantics=("parallel",)),
    )(xt, w1t, b1c, w3c, b3)

    # (1, N) -> (N, 1) is a free metadata reshape.
    return out.reshape(n, 1)


if __name__ == "__main__":
    key = jax.random.PRNGKey(0)
    k_x, k_w1, k_b1, k_w3, k_b3 = jax.random.split(key, 5)

    # Shapes consistent with the module: n=50 rows, input_dim=2, hidden=10, out=1.
    N, INPUT_DIM, HIDDEN, OUT = 50, 2, 10, 1

    # X ~ 5 * N(0,1) (as in the script), weights ~ N(0, 0.1) (as in __init__),
    # biases small uniform.
    x = 5.0 * jax.random.normal(k_x, (N, INPUT_DIM), dtype=jnp.float32)
    w1 = 0.1 * jax.random.normal(k_w1, (INPUT_DIM, HIDDEN), dtype=jnp.float32)
    b1 = jax.random.uniform(k_b1, (HIDDEN,), dtype=jnp.float32,
                            minval=-0.1, maxval=0.1)
    w3 = 0.1 * jax.random.normal(k_w3, (HIDDEN, OUT), dtype=jnp.float32)
    b3 = jax.random.uniform(k_b3, (OUT,), dtype=jnp.float32,
                            minval=-0.1, maxval=0.1)

    params = prepare_h_params(w1, b1, w3, b3)   # one-time prep, not per call
    out = h_forward(x, params)
    jax.block_until_ready(out)

    # Reference check in plain JAX.
    ref = jnp.maximum(jnp.maximum(x @ w1 + b1, 0.0) @ w3 + b3, 0.0) + 1e-5
    assert out.shape == (N, OUT)
    assert jnp.allclose(out, ref, atol=1e-5, rtol=1e-5)

    print("KERNEL_OK")
</pallas_src>

<mosaic_0001>
module attributes {stable_mosaic.version = 11 : i64} {
  func.func @_mlp_kernel(%arg0: i32, %arg1: memref<2x50xf32, #tpu.memory_space<vmem>>, %arg2: memref<10x2xf32, #tpu.memory_space<vmem>>, %arg3: memref<10x1xf32, #tpu.memory_space<vmem>>, %arg4: memref<10x1xf32, #tpu.memory_space<vmem>>, %arg5: memref<1xf32, #tpu.memory_space<smem>>, %arg6: memref<1x50xf32, #tpu.memory_space<vmem>>) attributes {dimension_semantics = [#tpu.dimension_semantics<parallel>], iteration_bounds = array<i64: 1>, scalar_prefetch = 0 : i64, scratch_operands = 0 : i64, tpu.core_type = #tpu.core_type<tc>, window_params = [{transform_indices = @transform_0, window_bounds = array<i64: 2, 50>}, {pipeline_mode = #tpu.pipeline_mode<synchronous>, transform_indices = @transform_1, window_bounds = array<i64: 10, 2>}, {pipeline_mode = #tpu.pipeline_mode<synchronous>, transform_indices = @transform_2, window_bounds = array<i64: 10, 1>}, {pipeline_mode = #tpu.pipeline_mode<synchronous>, transform_indices = @transform_3, window_bounds = array<i64: 10, 1>}, {transform_indices = @transform_4, window_bounds = array<i64: 1>}, {transform_indices = @transform_5, window_bounds = array<i64: 1, 50>}]} {
    %c0 = arith.constant 0 : index
    %c0_0 = arith.constant 0 : index
    %0 = vector.load %arg1[%c0, %c0_0] : memref<2x50xf32, #tpu.memory_space<vmem>>, vector<2x50xf32>
    %c0_1 = arith.constant 0 : index
    %c0_2 = arith.constant 0 : index
    %1 = vector.load %arg3[%c0_1, %c0_2] : memref<10x1xf32, #tpu.memory_space<vmem>>, vector<10x1xf32>
    %c0_3 = arith.constant 0 : index
    %c0_4 = arith.constant 0 : index
    %2 = vector.load %arg2[%c0_3, %c0_4] : memref<10x2xf32, #tpu.memory_space<vmem>>, vector<10x1xf32>
    %3 = vector.extract_strided_slice %0 {offsets = [0, 0], sizes = [1, 50], strides = [1, 1]} : vector<2x50xf32> to vector<1x50xf32>
    %4 = vector.broadcast %2 : vector<10x1xf32> to vector<10x50xf32>
    %5 = vector.broadcast %3 : vector<1x50xf32> to vector<10x50xf32>
    %6 = arith.mulf %4, %5 : vector<10x50xf32>
    %7 = vector.broadcast %1 : vector<10x1xf32> to vector<10x50xf32>
    %8 = arith.addf %7, %6 : vector<10x50xf32>
    %c0_5 = arith.constant 0 : index
    %c1 = arith.constant 1 : index
    %9 = vector.load %arg2[%c0_5, %c1] : memref<10x2xf32, #tpu.memory_space<vmem>>, vector<10x1xf32>
    %10 = vector.extract_strided_slice %0 {offsets = [1, 0], sizes = [1, 50], strides = [1, 1]} : vector<2x50xf32> to vector<1x50xf32>
    %11 = vector.broadcast %9 : vector<10x1xf32> to vector<10x50xf32>
    %12 = vector.broadcast %10 : vector<1x50xf32> to vector<10x50xf32>
    %13 = arith.mulf %11, %12 : vector<10x50xf32>
    %14 = arith.addf %8, %13 : vector<10x50xf32>
    %cst = arith.constant 0.000000e+00 : f32
    %15 = vector.broadcast %cst : f32 to vector<10x50xf32>
    %16 = arith.maximumf %14, %15 : vector<10x50xf32>
    %c0_6 = arith.constant 0 : index
    %c0_7 = arith.constant 0 : index
    %17 = vector.load %arg4[%c0_6, %c0_7] : memref<10x1xf32, #tpu.memory_space<vmem>>, vector<10x1xf32>
    %18 = vector.broadcast %17 : vector<10x1xf32> to vector<10x50xf32>
    %19 = arith.mulf %16, %18 : vector<10x50xf32>
    %cst_8 = arith.constant dense<0.000000e+00> : vector<50xf32>
    %20 = vector.multi_reduction <add>, %19, %cst_8 [0] : vector<10x50xf32> to vector<50xf32>
    %21 = vector.shape_cast %20 : vector<50xf32> to vector<1x50xf32>
    %c0_9 = arith.constant 0 : index
    %22 = memref.load %arg5[%c0_9] : memref<1xf32, #tpu.memory_space<smem>>
    %23 = vector.broadcast %22 : f32 to vector<1x50xf32>
    %24 = arith.addf %21, %23 : vector<1x50xf32>
    %cst_10 = arith.constant 0.000000e+00 : f32
    %25 = vector.broadcast %cst_10 : f32 to vector<1x50xf32>
    %26 = arith.maximumf %24, %25 : vector<1x50xf32>
    %cst_11 = arith.constant 9.99999974E-6 : f32
    %27 = vector.broadcast %cst_11 : f32 to vector<1x50xf32>
    %28 = arith.addf %26, %27 : vector<1x50xf32>
    %c0_12 = arith.constant 0 : index
    %c0_13 = arith.constant 0 : index
    %29 = vector.load %arg6[%c0_12, %c0_13] : memref<1x50xf32, #tpu.memory_space<vmem>>, vector<1x50xf32>
    tpu.vector_store %arg6[%c0_12, %c0_13], %28 {strides = array<i32>} : memref<1x50xf32, #tpu.memory_space<vmem>>, vector<1x50xf32>,
    return
  }
  func.func @transform_0(%arg0: i32) -> (i32, i32) {
    %c0_i32 = arith.constant 0 : i32
    %c0_i32_0 = arith.constant 0 : i32
    return %c0_i32, %arg0 : i32, i32
  }
  func.func @transform_1(%arg0: i32) -> (i32, i32) {
    %c0_i32 = arith.constant 0 : i32
    %c0_i32_0 = arith.constant 0 : i32
    %c0_i32_1 = arith.constant 0 : i32
    return %c0_i32, %c0_i32_0 : i32, i32
  }
  func.func @transform_2(%arg0: i32) -> (i32, i32) {
    %c0_i32 = arith.constant 0 : i32
    %c0_i32_0 = arith.constant 0 : i32
    %c0_i32_1 = arith.constant 0 : i32
    return %c0_i32, %c0_i32_0 : i32, i32
  }
  func.func @transform_3(%arg0: i32) -> (i32, i32) {
    %c0_i32 = arith.constant 0 : i32
    %c0_i32_0 = arith.constant 0 : i32
    %c0_i32_1 = arith.constant 0 : i32
    return %c0_i32, %c0_i32_0 : i32, i32
  }
  func.func @transform_4(%arg0: i32) -> i32 {
    %c0_i32 = arith.constant 0 : i32
    %c0_i32_0 = arith.constant 0 : i32
    return %c0_i32 : i32
  }
  func.func @transform_5(%arg0: i32) -> (i32, i32) {
    %c0_i32 = arith.constant 0 : i32
    %c0_i32_0 = arith.constant 0 : i32
    return %c0_i32, %arg0 : i32, i32
  }
}

</mosaic_0001>

<llo_original>
// kernel: h_forward.1
$region0: #{h_forward.1}
  #allocation0 [shape = 'u32[]', space=smem, size = 0x4, offset = 0x4, fixed_abs, tag = 'smem constant byte address 0x4 - core index']
  #allocation1 [shape = 'u32[144,128]{1,0:T(1,128)}', space=vmem, size = 0x12000, scoped, tag = 'internal scratch']
  #allocation2 [shape = 'f32[1]{0:T(128)S(6)}', space=smem, size = 0x200, scoped, tag = 'scoped memory for h_forward.1']
  %s0 = inlined_call_operand.vmem [shape: f32[2,50], index: 0, kind: input, shape index: {}]
  %s1 = inlined_call_operand.vmem [shape: f32[10,2], index: 1, kind: input, shape index: {}]
  %s2 = inlined_call_operand.vmem [shape: f32[10,1], index: 2, kind: input, shape index: {}]
  %s3 = inlined_call_operand.vmem [shape: f32[10,1], index: 3, kind: input, shape index: {}]
  %s4 = inlined_call_operand.<no memory space> [shape: f32[1], index: 4, kind: input, shape index: {}]
  %s5 = inlined_call_operand.hbm [shape: f32[1,50], index: 5, kind: output, shape index: {}]
  %s6 = sld [smem:[#allocation0]]
  $region30: #{h_forward.1} parent=0
    _
  %s8 = ssub.s32 1, %s6
  %s9 = scalar_select 0, %s8, %s6
  %10 = sst [smem:[#allocation2]] %s4
  $region1: #{h_forward.1} parent=0
    #allocation3 [shape = 'u8[512]{0}', space=vmem, size = 0x400, scoped, tag = 'output window, operand 0, single buffered']
    #allocation4 [shape = 's32[1]{0}', space=sflag, size = 0x4, scoped, tag = 'scoped memory for h_forward.1']
    %11 = vsyncpa [#allocation4], 0
    // Predicated region
    $region2: #{h_forward.1} parent=1 // pred_check
      _
    $region3: #{h_forward.1} parent=1 // pred_check_branch
      %13 = sbr.rel (0) target = $region5
    $region4: #{h_forward.1} parent=1 // pred_region
      _
    $region5: #{h_forward.1} parent=1 // pred_fallthru
      _
    // Predicated region
    $region6: #{h_forward.1} parent=1 // pred_check
      _
    $region7: #{h_forward.1} parent=1 // pred_check_branch
      %15 = sbr.rel (0) target = $region9
    $region8: #{h_forward.1} parent=1 // pred_region
      _
    $region9: #{h_forward.1} parent=1 // pred_fallthru
      _
    // Predicated region
    $region10: #{h_forward.1} parent=1 // pred_check
      _
    $region11: #{h_forward.1} parent=1 // pred_check_branch
      %17 = sbr.rel (0) target = $region13
    $region12: #{h_forward.1} parent=1 // pred_region
      _
    $region13: #{h_forward.1} parent=1 // pred_fallthru
      _
    // Predicated region
    $region14: #{h_forward.1} parent=1 // pred_check
      _
    $region15: #{h_forward.1} parent=1 // pred_check_branch
      %19 = sbr.rel (0) target = $region17
    $region16: #{h_forward.1} parent=1 // pred_region
      _
    $region17: #{h_forward.1} parent=1 // pred_fallthru
      _
    // Predicated region
    $region18: #{h_forward.1} parent=1 // pred_check
      _
    $region19: #{h_forward.1} parent=1 // pred_check_branch
      %21 = sbr.rel (0) target = $region21
    $region20: #{h_forward.1} parent=1 // pred_region
      _
    $region21: #{h_forward.1} parent=1 // pred_fallthru
      _
    %v22 = vld [vmem:[%s0] sm:$0x3]
    %v23 = vld [vmem:[%s2] sm:$0xff]
    %v24 = vld [vmem:[%s2 + $0x8] sm:$0x3]
    %v25 = vld [vmem:[%s1] sm:$0xff]
    %v26 = vld [vmem:[%s1 + $0x8] sm:$0x3]
    %28 = vset.pattern.permute.xlu0 0
    %29 = vperm.xlu0 %28, %v25
    %v30 = vpop.permute.xlu0 %29
    %33 = vset.pattern.permute.xlu0 0
    %34 = vperm.xlu0 %33, %v26
    %v35 = vpop.permute.xlu0 %34
    %v37 = vlaneseq
    %v38 = vshrl.u32 %v37, 7
    %v39 = vsub.s32 0, %v38
    %v40 = vrot.slane %v22, %v39
    %v41 = vmul.f32 %v30, %v40
    %v42 = vmul.f32 %v35, %v40
    %44 = vset.pattern.permute.xlu0 0
    %45 = vperm.xlu0 %44, %v23
    %v46 = vpop.permute.xlu0 %45
    %49 = vset.pattern.permute.xlu0 0
    %50 = vperm.xlu0 %49, %v24
    %v51 = vpop.permute.xlu0 %50
    %v53 = vadd.f32 %v46, %v41
    %v54 = vadd.f32 %v51, %v42
    %55 = vset.pattern.permute.xlu0 1
    %56 = vperm.xlu0 %55, %v25
    %v57 = vpop.permute.xlu0 %56
    %59 = vset.pattern.permute.xlu0 1
    %60 = vperm.xlu0 %59, %v26
    %v61 = vpop.permute.xlu0 %60
    %v63 = vlaneseq
    %v64 = vshrl.u32 %v63, 7
    %v65 = vsub.s32 1, %v64
    %v66 = vrot.slane %v22, %v65
    %v67 = vmul.f32 %v57, %v66
    %v68 = vmul.f32 %v61, %v66
    %v69 = vadd.f32 %v53, %v67
    %v70 = vadd.f32 %v54, %v68
    %v71 = vmax.f32 %v69, 0.0
    %v72 = vmax.f32 %v70, 0.0
    %v73 = vld [vmem:[%s3] sm:$0xff]
    %v74 = vld [vmem:[%s3 + $0x8] sm:$0x3]
    %76 = vset.pattern.permute.xlu0 0
    %77 = vperm.xlu0 %76, %v73
    %v78 = vpop.permute.xlu0 %77
    %81 = vset.pattern.permute.xlu0 0
    %82 = vperm.xlu0 %81, %v74
    %v83 = vpop.permute.xlu0 %82
    %v85 = vmul.f32 %v71, %v78
    %v86 = vmul.f32 %v72, %v83
    %vm87 = vcmask 408576
    %v88 = vsel %vm87, %v85, 0.0
    %vm89 = vcmask 402432
    %v90 = vsel %vm89, %v86, 0.0
    %v91 = vadd.f32 %v88, %v90
    %v92 = vrot.slane %v91, 4
    %v93 = vadd.f32 %v91, %v92
    %v94 = vrot.slane %v93, 2
    %v95 = vadd.f32 %v93, %v94
    %v96 = vrot.slane %v95, 1
    %v97 = vadd.f32 %v95, %v96
    %s98 = sld [smem:[#allocation2]]
    %v99 = vstv %s98
    %v100 = vadd.f32 %v97, %v99
    %v101 = vmax.f32 %v100, 0.0
    %v102 = vadd.f32 %v101, 1e-05
    %vm103 = vcmask 401408
    %104 = vst.msk [vmem:[#allocation3] sm:$0x1] %vm103, %v102
    // Predicated region
    $region22: #{h_forward.1} parent=1 // pred_check
      _
    $region23: #{h_forward.1} parent=1 // pred_check_branch
      %106 = sbr.rel (0) target = $region25
    $region24: #{h_forward.1} parent=1 // pred_region
      %s108 = ssub.s32 16, 16
      %109 = vsyncadd [#allocation4], %s108
      %s111 = sshll.u32 [#allocation3], 4
      %s112 = int_to_ptr.vmem [resolvable:$true] %s111
      %114 = dma.vmem_to_hbm [thread:$0]  %s112, 16, %s5, [#allocation4]
    $region25: #{h_forward.1} parent=1 // pred_fallthru
      _
    // Predicated region
    $region26: #{h_forward.1} parent=1 // pred_check
      _
    $region27: #{h_forward.1} parent=1 // pred_check_branch
      %116 = sbr.rel (0) target = $region29
    $region28: #{h_forward.1} parent=1 // pred_region
      %117 = dma.done [#allocation4], 16
    $region29: #{h_forward.1} parent=1 // pred_fallthru
      _
    %118 = vsyncpa [#allocation4], 1

</llo_original>
